<compile_context>
chip_gen: v7x
topology: tpu7x:2x2x1
jax: 0.10.0
libtpu: 0.0.40
codegen_flags: <defaults>
</compile_context>

<pallas_src>
import functools

import jax
import jax.numpy as jnp
from jax import lax
from jax.experimental import pallas as pl
from jax.experimental.pallas import tpu as pltpu

EPS = 1e-5
LANE = 128
SUBLANE = 8


def _round_up(x, m):
    return ((x + m - 1) // m) * m


def _cdiv(a, b):
    return (a + b - 1) // b


@functools.lru_cache(maxsize=None)
def _tpu_vmem_capacity():
    """Physical VMEM bytes (per TensorCore); conservative fallback."""
    try:
        cap = int(pltpu.get_tpu_info().vmem_capacity_bytes)
        if cap > 0:
            return cap
    except Exception:
        pass
    return 64 * 1024 * 1024  # v7x-sized conservative default


def _vmem_limit():
    # ~96 MiB on v5e/v6e (128 MiB phys), ~48 MiB on v7x (64 MiB phys).
    return int(min(100 * 1024 * 1024, _tpu_vmem_capacity() * 3 // 4))


def _default_tile_m():
    return 2048 if _tpu_vmem_capacity() >= (100 << 20) else 1024


# ----------------------------- Pallas kernels ------------------------------- #
def _conv_stats_kernel(x_ref, w_ref, y_ref, s1_ref, s2_ref):
    """Pass 1: conv tile as a single MXU matmul + per-channel sum / sumsq.

    x_ref: (TILE_M, KCp) bf16     w_ref: (KCp, Cp) bf16
    y_ref: (TILE_M, Cp) bf16      s1/s2_ref: (1, 1, Cp) f32 resident per-split
    """
    y = jnp.dot(x_ref[...], w_ref[...], preferred_element_type=jnp.float32)
    y_ref[...] = y.astype(y_ref.dtype)

    @pl.when(pl.program_id(1) == 0)
    def _():
        s1_ref[...] = jnp.zeros_like(s1_ref)
        s2_ref[...] = jnp.zeros_like(s2_ref)

    # stats from the f32 accumulator (not the bf16-rounded store)
    s1_ref[...] += jnp.sum(y, axis=0, keepdims=True).reshape(s1_ref.shape)
    s2_ref[...] += jnp.sum(y * y, axis=0, keepdims=True).reshape(s2_ref.shape)


def _bn_act_kernel(apply_relu, has_residual, *refs):
    """Pass 2: folded BN affine (+ residual) (+ ReLU) on lane-dense tiles."""
    if has_residual:
        y_ref, sc_ref, sh_ref, r_ref, o_ref = refs
    else:
        y_ref, sc_ref, sh_ref, o_ref = refs

    out = y_ref[...].astype(jnp.float32) * sc_ref[...] + sh_ref[...]
    if has_residual:
        out = out + r_ref[...].astype(jnp.float32)
    if apply_relu:
        out = jnp.maximum(out, 0.0)
    o_ref[...] = out.astype(o_ref.dtype)


# ------------------------------ conv + BN unit ------------------------------ #
def conv_bn_act(x_cols, w_mat, gamma, beta, *, relu, residual=None,
                out_dtype=jnp.float32, tile_m=None):
    """conv (im2col matmul) -> BatchNorm(batch stats) [-> +residual] [-> ReLU].

    x_cols: (M, KC), w_mat: (KC, Cout), residual: (M, Cp) or None.
    Returns (M, Cp) in out_dtype with Cp = round_up(Cout, 128); padded output
    channels are exactly zero (gamma/beta padded with zeros).
    """
    M, KC = x_cols.shape
    KC2, Cout = w_mat.shape
    assert KC == KC2, (KC, KC2)

    if tile_m is None:
        tile_m = _default_tile_m()
    limit = _vmem_limit()

    cp = _round_up(Cout, LANE)       # lane-dense output channels
    kcp = _round_up(KC, LANE)        # lane-dense contraction dim

    tm = min(_round_up(tile_m, SUBLANE), _round_up(M, SUBLANE))
    # Shrink the M tile if the double-buffered pass-1 working set would blow
    # the scoped VMEM budget (instead of failing on deep layers).
    while tm > 64:
        need = 2 * (tm * kcp + kcp * cp + tm * cp) * 2 + 4 * cp * 4
        if need <= int(limit * 0.9):
            break
        tm = max(_round_up(tm // 2, SUBLANE), 64)
        if tm == 64:
            break

    n_tiles = _cdiv(M, tm)
    n_split = 2 if n_tiles >= 2 else 1   # pays only on v7x (2 TCs); harmless elsewhere
    tps = _cdiv(n_tiles, n_split)        # tiles per split
    mp = n_split * tps * tm

    # bf16 MXU inputs; padded M rows / KC columns are zero -> contribute 0.
    x_p = jnp.pad(x_cols.astype(jnp.bfloat16), ((0, mp - M), (0, kcp - KC)))
    w_p = jnp.pad(w_mat.astype(jnp.bfloat16), ((0, kcp - KC), (0, cp - Cout)))
    g_p = jnp.pad(gamma.astype(jnp.float32), (0, cp - Cout))
    b_p = jnp.pad(beta.astype(jnp.float32), (0, cp - Cout))

    # ---- Pass 1: conv + per-split stats.  Outer split axis "parallel"
    # (megacore), inner M axis "arbitrary" (resident stats accumulator).
    y, s1, s2 = pl.pallas_call(
        _conv_stats_kernel,
        out_shape=(jax.ShapeDtypeStruct((mp, cp), jnp.bfloat16),
                   jax.ShapeDtypeStruct((n_split, 1, cp), jnp.float32),
                   jax.ShapeDtypeStruct((n_split, 1, cp), jnp.float32)),
        grid=(n_split, tps),
        in_specs=[pl.BlockSpec((tm, kcp), lambda c, i: (c * tps + i, 0)),
                  pl.BlockSpec((kcp, cp), lambda c, i: (0, 0))],
        out_specs=(pl.BlockSpec((tm, cp), lambda c, i: (c * tps + i, 0)),
                   pl.BlockSpec((1, 1, cp), lambda c, i: (c, 0, 0)),
                   pl.BlockSpec((1, 1, cp), lambda c, i: (c, 0, 0))),
        compiler_params=pltpu.CompilerParams(
            dimension_semantics=("parallel", "arbitrary"),
            vmem_limit_bytes=limit),
    )(x_p, w_p)

    # ---- BN batch stats (training mode, biased var) folded with gamma/beta
    # into a single per-channel scale/shift. O(Cout) work, done once.
    ssum = jnp.sum(s1, axis=0).reshape(cp)
    ssq = jnp.sum(s2, axis=0).reshape(cp)
    mean = ssum / float(M)
    var = jnp.maximum(ssq / float(M) - mean * mean, 0.0)
    inv = lax.rsqrt(var + EPS)
    scale = (g_p * inv).reshape(1, cp)
    shift = (b_p - mean * g_p * inv).reshape(1, cp)

    # ---- Pass 2: normalize (+ residual) (+ ReLU); fully parallel over M.
    inputs = [y, scale, shift]
    in_specs = [pl.BlockSpec((tm, cp), lambda i: (i, 0)),
                pl.BlockSpec((1, cp), lambda i: (0, 0)),
                pl.BlockSpec((1, cp), lambda i: (0, 0))]
    has_res = residual is not None
    if has_res:
        r_p = jnp.pad(residual.astype(jnp.bfloat16),
                      ((0, mp - M), (0, cp - residual.shape[1])))
        inputs.append(r_p)
        in_specs.append(pl.BlockSpec((tm, cp), lambda i: (i, 0)))

    out = pl.pallas_call(
        functools.partial(_bn_act_kernel, relu, has_res),
        out_shape=jax.ShapeDtypeStruct((mp, cp), out_dtype),
        grid=(mp // tm,),
        in_specs=in_specs,
        out_specs=pl.BlockSpec((tm, cp), lambda i: (i, 0)),
        compiler_params=pltpu.CompilerParams(
            dimension_semantics=("parallel",),
            vmem_limit_bytes=limit),
    )(*inputs)

    # Keep channel padding (lane-dense chaining between units); drop row pad.
    return out[:M]


# ------------------------------- JAX glue ------------------------------------ #
def _im2col(x_pad, ksize, stride, Ho, Wo):
    """Gather conv taps, folded over the contraction: (M, K*C), M=N*Ho*Wo."""
    N = x_pad.shape[0]
    C = x_pad.shape[-1]
    cols = []
    for kh in range(ksize):
        for kw in range(ksize):
            sl = x_pad[:, kh:kh + stride * (Ho - 1) + 1:stride,
                       kw:kw + stride * (Wo - 1) + 1:stride, :]
            cols.append(sl.reshape(N * Ho * Wo, C))
    return jnp.concatenate(cols, axis=-1)   # (kh, kw, cin) ordering == HWIO flatten


def basic_block_forward(x_nchw, params, stride=1, tile_m=None):
    """BasicBlock.forward.  x_nchw: (N, Cin, H, W) float32 (PyTorch NCHW)."""
    N, Cin, H, W = x_nchw.shape
    planes = params["w1"].shape[-1]
    # NHWC + bf16 up front so the 9x-expanded im2col cols are materialized bf16.
    x = jnp.transpose(x_nchw, (0, 2, 3, 1)).astype(jnp.bfloat16)

    Ho = (H + 2 - 3) // stride + 1
    Wo = (W + 2 - 3) // stride + 1
    M = N * Ho * Wo

    # conv1 (3x3, stride, pad=1) -> bn1 -> relu  (bf16, channel-padded output)
    x_pad = jnp.pad(x, ((0, 0), (1, 1), (1, 1), (0, 0)))
    cols1 = _im2col(x_pad, 3, stride, Ho, Wo)                      # (M, 9*Cin) bf16
    w1 = params["w1"].reshape(9 * Cin, planes)
    out1 = conv_bn_act(cols1, w1, params["g1"], params["b1"],
                       relu=True, out_dtype=jnp.bfloat16, tile_m=tile_m)  # (M, cp)
    cp = out1.shape[1]

    # shortcut branch (bf16, channel-padded to cp)
    if stride != 1 or Cin != planes:
        xs = x[:, ::stride, ::stride, :].reshape(M, Cin)
        ws = params["ws"].reshape(Cin, planes)
        shortcut = conv_bn_act(xs, ws, params["gs"], params["bs"],
                               relu=False, out_dtype=jnp.bfloat16,
                               tile_m=tile_m)                      # (M, cp)
    else:
        shortcut = jnp.pad(x.reshape(M, Cin), ((0, 0), (0, cp - Cin)))

    # conv2 (3x3, stride 1, pad=1) -> bn2 -> (+ shortcut) -> relu
    o1_pad = jnp.pad(out1.reshape(N, Ho, Wo, cp),
                     ((0, 0), (1, 1), (1, 1), (0, 0)))
    cols2 = _im2col(o1_pad, 3, 1, Ho, Wo)                          # (M, 9*cp) bf16
    # zero rows for the padded input channels -> they contribute nothing.
    w2_p = jnp.zeros((3, 3, cp, planes), jnp.float32)
    w2_p = w2_p.at[:, :, :planes, :].set(params["w2"])
    out2 = conv_bn_act(cols2, w2_p.reshape(9 * cp, planes),
                       params["g2"], params["b2"],
                       relu=True, residual=shortcut,
                       out_dtype=jnp.float32, tile_m=tile_m)       # (M, cp)

    out2 = out2[:, :planes].reshape(N, Ho, Wo, planes)
    return jnp.transpose(out2, (0, 3, 1, 2))                       # NCHW


# ---------------------------- pure-JAX reference ----------------------------- #
def reference_forward(x_nchw, params, stride=1):
    x = jnp.transpose(x_nchw, (0, 2, 3, 1)).astype(jnp.float32)
    Cin = x.shape[-1]
    planes = params["w1"].shape[-1]

    def conv(x, w, s, pad):
        return lax.conv_general_dilated(
            x, w, (s, s), pad, dimension_numbers=("NHWC", "HWIO", "NHWC"))

    def bn(y, g, b):
        mean = jnp.mean(y, axis=(0, 1, 2), keepdims=True)
        var = jnp.mean((y - mean) ** 2, axis=(0, 1, 2), keepdims=True)
        return (y - mean) * lax.rsqrt(var + EPS) * g + b

    out = jax.nn.relu(bn(conv(x, params["w1"], stride, ((1, 1), (1, 1))),
                         params["g1"], params["b1"]))
    out = bn(conv(out, params["w2"], 1, ((1, 1), (1, 1))),
             params["g2"], params["b2"])
    if stride != 1 or Cin != planes:
        sc = bn(conv(x, params["ws"], stride, "VALID"),
                params["gs"], params["bs"])
    else:
        sc = x
    out = jax.nn.relu(out + sc)
    return jnp.transpose(out, (0, 3, 1, 2))


# ----------------------------------- main ------------------------------------ #
if __name__ == "__main__":
    key = jax.random.PRNGKey(0)

    def make_params(k, in_planes, planes, need_proj):
        ks = jax.random.split(k, 9)
        p = {
            # conv weights stored HWIO (PyTorch OIHW transposed to (kh, kw, in, out))
            "w1": jax.random.normal(ks[0], (3, 3, in_planes, planes), jnp.float32) * 0.1,
            "g1": 1.0 + 0.1 * jax.random.normal(ks[1], (planes,), jnp.float32),
            "b1": 0.05 * jax.random.normal(ks[2], (planes,), jnp.float32),
            "w2": jax.random.normal(ks[3], (3, 3, planes, planes), jnp.float32) * 0.1,
            "g2": 1.0 + 0.1 * jax.random.normal(ks[4], (planes,), jnp.float32),
            "b2": 0.05 * jax.random.normal(ks[5], (planes,), jnp.float32),
        }
        if need_proj:
            p["ws"] = jax.random.normal(ks[6], (1, 1, in_planes, planes), jnp.float32) * 0.1
            p["gs"] = 1.0 + 0.1 * jax.random.normal(ks[7], (planes,), jnp.float32)
            p["bs"] = 0.05 * jax.random.normal(ks[8], (planes,), jnp.float32)
        return p

    configs = [
        # (N, in_planes, planes, H, W, stride)
        (2, 4, 8, 16, 16, 1),   # projection shortcut (channel expansion)
        (2, 8, 8, 16, 16, 2),   # projection shortcut (stride 2)
        (2, 8, 8, 16, 16, 1),   # identity shortcut
    ]
    for idx, (N, cin, planes, H, W, stride) in enumerate(configs):
        kp, kx = jax.random.split(jax.random.fold_in(key, idx))
        need_proj = stride != 1 or cin != planes
        params = make_params(kp, cin, planes, need_proj)
        x = jax.random.normal(kx, (N, cin, H, W), jnp.float32)

        # tile_m=128 so the M grid has several steps (exercises the 2-D grid
        # with per-split stats) at these toy sizes.
        out = jax.block_until_ready(
            basic_block_forward(x, params, stride=stride, tile_m=128))
        ref = jax.block_until_ready(reference_forward(x, params, stride=stride))

        Ho = (H + 2 - 3) // stride + 1
        Wo = (W + 2 - 3) // stride + 1
        assert out.shape == (N, planes, Ho, Wo), out.shape
        # bf16 MXU inputs, bf16 conv intermediate + residual (f32 accumulation
        # and f32 BN math) vs. an all-f32 reference -> bf16-level tolerance.
        max_err = float(jnp.max(jnp.abs(out - ref)))
        assert jnp.allclose(out, ref, rtol=5e-2, atol=8e-2), (idx, max_err)

    print("KERNEL_OK")
</pallas_src>

<mosaic_0001>
module attributes {stable_mosaic.version = 11 : i64} {
  func.func @_conv_stats_kernel(%arg0: i32, %arg1: i32, %arg2: memref<128x128xbf16, #tpu.memory_space<vmem>>, %arg3: memref<128x128xbf16, #tpu.memory_space<vmem>>, %arg4: memref<128x128xbf16, #tpu.memory_space<vmem>>, %arg5: memref<1x1x128xf32, #tpu.memory_space<vmem>>, %arg6: memref<1x1x128xf32, #tpu.memory_space<vmem>>) attributes {dimension_semantics = [#tpu.dimension_semantics<parallel>, #tpu.dimension_semantics<arbitrary>], iteration_bounds = array<i64: 2, 2>, scalar_prefetch = 0 : i64, scratch_operands = 0 : i64, tpu.core_type = #tpu.core_type<tc>, window_params = [{transform_indices = @transform_0, window_bounds = array<i64: 128, 128>}, {pipeline_mode = #tpu.pipeline_mode<synchronous>, transform_indices = @transform_1, window_bounds = array<i64: 128, 128>}, {transform_indices = @transform_2, window_bounds = array<i64: 128, 128>}, {transform_indices = @transform_3, window_bounds = array<i64: 1, 1, 128>}, {transform_indices = @transform_4, window_bounds = array<i64: 1, 1, 128>}]} {
    %c0 = arith.constant 0 : index
    %c0_0 = arith.constant 0 : index
    %0 = vector.load %arg2[%c0, %c0_0] : memref<128x128xbf16, #tpu.memory_space<vmem>>, vector<128x128xbf16>
    %c0_1 = arith.constant 0 : index
    %c0_2 = arith.constant 0 : index
    %1 = vector.load %arg3[%c0_1, %c0_2] : memref<128x128xbf16, #tpu.memory_space<vmem>>, vector<128x128xbf16>
    %cst = arith.constant dense<0.000000e+00> : vector<128x128xf32>
    %2 = tpu.matmul %0, %1, %cst {dimension_numbers = #tpu.dot_dimension_numbers<[1], [0], [0], [1], [0, 0, 1, 1], [], []>} : vector<128x128xbf16>, vector<128x128xbf16>, vector<128x128xf32> -> vector<128x128xf32>
    %3 = arith.truncf %2 : vector<128x128xf32> to vector<128x128xbf16>
    %c0_3 = arith.constant 0 : index
    %c0_4 = arith.constant 0 : index
    %4 = vector.load %arg4[%c0_3, %c0_4] : memref<128x128xbf16, #tpu.memory_space<vmem>>, vector<128x128xbf16>
    tpu.vector_store %arg4[%c0_3, %c0_4], %3 {strides = array<i32>} : memref<128x128xbf16, #tpu.memory_space<vmem>>, vector<128x128xbf16>,
    %c0_i32 = arith.constant 0 : i32
    %5 = arith.cmpi eq, %arg1, %c0_i32 : i32
    %6 = arith.extui %5 : i1 to i32
    %c0_i32_5 = arith.constant 0 : i32
    %7 = arith.cmpi ne, %6, %c0_i32_5 : i32
    scf.if %7 {
      %cst_20 = arith.constant 0.000000e+00 : f32
      %21 = vector.broadcast %cst_20 : f32 to vector<1x1x128xf32>
      %c0_21 = arith.constant 0 : index
      %c0_22 = arith.constant 0 : index
      %c0_23 = arith.constant 0 : index
      %22 = vector.load %arg5[%c0_21, %c0_22, %c0_23] : memref<1x1x128xf32, #tpu.memory_space<vmem>>, vector<1x1x128xf32>
      tpu.vector_store %arg5[%c0_21, %c0_22, %c0_23], %21 {strides = array<i32>} : memref<1x1x128xf32, #tpu.memory_space<vmem>>, vector<1x1x128xf32>,
      %cst_24 = arith.constant 0.000000e+00 : f32
      %23 = vector.broadcast %cst_24 : f32 to vector<1x1x128xf32>
      %c0_25 = arith.constant 0 : index
      %c0_26 = arith.constant 0 : index
      %c0_27 = arith.constant 0 : index
      %24 = vector.load %arg6[%c0_25, %c0_26, %c0_27] : memref<1x1x128xf32, #tpu.memory_space<vmem>>, vector<1x1x128xf32>
      tpu.vector_store %arg6[%c0_25, %c0_26, %c0_27], %23 {strides = array<i32>} : memref<1x1x128xf32, #tpu.memory_space<vmem>>, vector<1x1x128xf32>,
    } else {
    }
    %c0_6 = arith.constant 0 : index
    %c0_7 = arith.constant 0 : index
    %c0_8 = arith.constant 0 : index
    %8 = vector.load %arg5[%c0_6, %c0_7, %c0_8] : memref<1x1x128xf32, #tpu.memory_space<vmem>>, vector<1x1x128xf32>
    %cst_9 = arith.constant dense<0.000000e+00> : vector<128xf32>
    %9 = vector.multi_reduction <add>, %2, %cst_9 [0] : vector<128x128xf32> to vector<128xf32>
    %10 = vector.shape_cast %9 : vector<128xf32> to vector<1x128xf32>
    %11 = vector.shape_cast %10 : vector<1x128xf32> to vector<1x1x128xf32>
    %12 = arith.addf %8, %11 : vector<1x1x128xf32>
    %c0_10 = arith.constant 0 : index
    %c0_11 = arith.constant 0 : index
    %c0_12 = arith.constant 0 : index
    %13 = vector.load %arg5[%c0_10, %c0_11, %c0_12] : memref<1x1x128xf32, #tpu.memory_space<vmem>>, vector<1x1x128xf32>
    tpu.vector_store %arg5[%c0_10, %c0_11, %c0_12], %12 {strides = array<i32>} : memref<1x1x128xf32, #tpu.memory_space<vmem>>, vector<1x1x128xf32>,
    %c0_13 = arith.constant 0 : index
    %c0_14 = arith.constant 0 : index
    %c0_15 = arith.constant 0 : index
    %14 = vector.load %arg6[%c0_13, %c0_14, %c0_15] : memref<1x1x128xf32, #tpu.memory_space<vmem>>, vector<1x1x128xf32>
    %15 = arith.mulf %2, %2 : vector<128x128xf32>
    %cst_16 = arith.constant dense<0.000000e+00> : vector<128xf32>
    %16 = vector.multi_reduction <add>, %15, %cst_16 [0] : vector<128x128xf32> to vector<128xf32>
    %17 = vector.shape_cast %16 : vector<128xf32> to vector<1x128xf32>
    %18 = vector.shape_cast %17 : vector<1x128xf32> to vector<1x1x128xf32>
    %19 = arith.addf %14, %18 : vector<1x1x128xf32>
    %c0_17 = arith.constant 0 : index
    %c0_18 = arith.constant 0 : index
    %c0_19 = arith.constant 0 : index
    %20 = vector.load %arg6[%c0_17, %c0_18, %c0_19] : memref<1x1x128xf32, #tpu.memory_space<vmem>>, vector<1x1x128xf32>
    tpu.vector_store %arg6[%c0_17, %c0_18, %c0_19], %19 {strides = array<i32>} : memref<1x1x128xf32, #tpu.memory_space<vmem>>, vector<1x1x128xf32>,
    return
  }
  func.func @transform_0(%arg0: i32, %arg1: i32) -> (i32, i32) {
    %c2_i32 = arith.constant 2 : i32
    %0 = arith.muli %arg0, %c2_i32 : i32
    %1 = arith.addi %0, %arg1 : i32
    %c0_i32 = arith.constant 0 : i32
    %c0_i32_0 = arith.constant 0 : i32
    return %1, %c0_i32 : i32, i32
  }
  func.func @transform_1(%arg0: i32, %arg1: i32) -> (i32, i32) {
    %c0_i32 = arith.constant 0 : i32
    %c0_i32_0 = arith.constant 0 : i32
    %c0_i32_1 = arith.constant 0 : i32
    return %c0_i32, %c0_i32_0 : i32, i32
  }
  func.func @transform_2(%arg0: i32, %arg1: i32) -> (i32, i32) {
    %c2_i32 = arith.constant 2 : i32
    %0 = arith.muli %arg0, %c2_i32 : i32
    %1 = arith.addi %0, %arg1 : i32
    %c0_i32 = arith.constant 0 : i32
    %c0_i32_0 = arith.constant 0 : i32
    return %1, %c0_i32 : i32, i32
  }
  func.func @transform_3(%arg0: i32, %arg1: i32) -> (i32, i32, i32) {
    %c0_i32 = arith.constant 0 : i32
    %c0_i32_0 = arith.constant 0 : i32
    %c0_i32_1 = arith.constant 0 : i32
    return %arg0, %c0_i32, %c0_i32_0 : i32, i32, i32
  }
  func.func @transform_4(%arg0: i32, %arg1: i32) -> (i32, i32, i32) {
    %c0_i32 = arith.constant 0 : i32
    %c0_i32_0 = arith.constant 0 : i32
    %c0_i32_1 = arith.constant 0 : i32
    return %arg0, %c0_i32, %c0_i32_0 : i32, i32, i32
  }
}

</mosaic_0001>

<llo_original>
// kernel: tpu_custom_call.1
$region0: #{tpu_custom_call.1}
  #allocation0 [shape = 'u32[]', space=smem, size = 0x4, offset = 0x4, fixed_abs, tag = 'smem constant byte address 0x4 - core index']
  #allocation1 [shape = 'u32[144,128]{1,0:T(1,128)}', space=vmem, size = 0x12000, scoped, tag = 'internal scratch']
  %s0 = inlined_call_operand.hbm [shape: bf16[512,128], index: 0, kind: input, shape index: {}]
  %s1 = inlined_call_operand.hbm [shape: bf16[128,128], index: 1, kind: input, shape index: {}]
  %s2 = inlined_call_operand.hbm [shape: bf16[512,128], index: 2, kind: output, shape index: {0}]
  %s3 = inlined_call_operand.hbm [shape: f32[2,1,128], index: 3, kind: output, shape index: {1}]
  %s4 = inlined_call_operand.hbm [shape: f32[2,1,128], index: 4, kind: output, shape index: {2}]
  %5 = xla_tuple %s2, %s3, %s4
  %s6 = sld [smem:[#allocation0]]
  $region69: #{tpu_custom_call.1} parent=0
    _
  %s8 = ssub.s32 1, %s6
  %s9 = scalar_select 0, %s8, %s6
  $region1: #{tpu_custom_call.1} parent=0
    #allocation2 [shape = 'u8[65536]{0}', space=vmem, size = 0x10000, scoped, tag = 'input window, operand 0']
    #allocation3 [shape = 's32[2]{0}', space=sflag, size = 0x8, scoped, tag = 'scoped memory for tpu_custom_call.1']
    #allocation4 [shape = 's32[2]{0}', space=sflag, size = 0x8, scoped, tag = 'scoped memory for tpu_custom_call.1']
    #allocation5 [shape = 'u8[32768]{0}', space=vmem, size = 0x8000, scoped, tag = 'input window, operand 1, single buffered']
    #allocation6 [shape = 's32[1]{0}', space=sflag, size = 0x4, scoped, tag = 'scoped memory for tpu_custom_call.1']
    #allocation7 [shape = 'u8[65536]{0}', space=vmem, size = 0x10000, scoped, tag = 'output window, operand 0']
    #allocation8 [shape = 'u8[1024]{0}', space=vmem, size = 0x400, scoped, tag = 'output window, operand 1']
    #allocation9 [shape = 's32[2]{0}', space=sflag, size = 0x8, scoped, tag = 'scoped memory for tpu_custom_call.1']
    #allocation10 [shape = 'u8[1024]{0}', space=vmem, size = 0x400, scoped, tag = 'output window, operand 2']
    %10 = vsyncpa [#allocation3], 0
    %s11 = scalar_lea.sflag [#allocation3], 1
    %12 = vsyncpa %s11, 0
    %13 = vsyncpa [#allocation6], 0
    %14 = vsyncpa [#allocation4], 0
    %s15 = scalar_lea.sflag [#allocation4], 1
    %16 = vsyncpa %s15, 0
    %17 = vsyncpa [#allocation9], 0
    %s18 = scalar_lea.sflag [#allocation9], 1
    %19 = vsyncpa %s18, 0
    loop: start=0, step=1, limit=6
    $region2: #{tpu_custom_call.1} parent=1 // loop_pre_header
      _
    $region3: #{tpu_custom_call.1} parent=1 // loop_header
      %s21 = sphi 0, %s25
      %p22 = scmp.ge.s32.totalorder %s21, 6
      %s28 = sphi 0, %s40
      %s29 = sphi 0, %s36
      %s30 = sphi 0, %s28
      %s31 = sphi 0, %s29
      %s32 = sphi 0, %s30
      %s33 = sphi 0, %s31
      %s47 = sphi 0, %s49
      %s50 = sphi 0, %s47
      %s51 = sphi 0, %s50
      %s67 = sphi 0, %s51
      %s71 = sphi 0, %s71
      %s73 = sphi 0, %s71
      %s74 = sphi 0, %s73
      %s88 = sphi 0, %s74
      %s98 = sphi 0, %s100
      %s101 = sphi 0, %s98
      %s102 = sphi 0, %s101
      %s118 = sphi 0, %s102
      %s124 = sphi 0, %s126
      %s127 = sphi 0, %s124
      %s128 = sphi 0, %s127
      %s144 = sphi 0, %s128
      %s150 = sphi 0, %s152
      %s153 = sphi 0, %s150
      %s154 = sphi 0, %s153
      %s170 = sphi 0, %s154
    $region4: #{tpu_custom_call.1} parent=1 // loop_header_branch
      %24 = sbr.rel (%p22) target = $region8
    $region5: #{tpu_custom_call.1} parent=1 // loop_body
      %s26 = ssub.s32 %s21, 1
      %s27 = ssub.s32 %s21, 2
      %s34 = sadd.s32 1, %s29
      %p35 = scmp.ge.s32.totalorder %s34, 2
      %s36 = scalar_select %p35, 0, %s34
      %s37 = sadd.s32 1, %s28
      %s38 = scalar_select %p35, %s37, %s28
      %p39 = scmp.ge.s32.totalorder %s38, 2
      %s40 = scalar_select %p39, 0, %s38
      %s41 = smul.u32 %s28, 2
      %s42 = sadd.s32 %s41, %s29
      %s43 = smul.u32 %s40, 2
      %s44 = sadd.s32 %s43, %s36
      %s45 = ssub.s32 %s42, %s44
      %p46 = scmp.eq.s32.totalorder %s45, 0
      %s48 = sadd.s32 %s47, 1
      %s49 = scalar_select %p46, %s47, %s48
      %p52 = pneg %p46
      %p53 = scmp.eq.s32.totalorder %s21, 3
      %p54 = por %p52, %p53
      %p55 = scmp.ne.s32.totalorder %s47, %s50
      %p56 = scmp.eq.s32.totalorder %s21, 0
      %p57 = por %p55, %p56
      %p58 = scmp.ne.s32.totalorder %s47, %s50
      %p59 = scmp.eq.s32.totalorder %s26, 3
      %p60 = por %p58, %p59
      %p61 = scmp.ne.s32.totalorder %s50, %s51
      %p62 = scmp.eq.s32.totalorder %s26, 0
      %p63 = por %p61, %p62
      %p64 = scmp.ne.s32.totalorder %s50, %s51
      %p65 = scmp.eq.s32.totalorder %s27, 3
      %p66 = por %p64, %p65
      %p68 = scmp.ne.s32.totalorder %s51, %s67
      %p69 = scmp.eq.s32.totalorder %s27, 0
      %p70 = por %p68, %p69
      %s72 = sadd.s32 %s71, 1
      %p75 = scmp.eq.s32.totalorder %s21, 3
      %p76 = scmp.ne.s32.totalorder %s71, %s73
      %p77 = scmp.eq.s32.totalorder %s21, 0
      %p78 = por %p76, %p77
      %p79 = scmp.ne.s32.totalorder %s71, %s73
      %p80 = scmp.eq.s32.totalorder %s26, 3
      %p81 = por %p79, %p80
      %p82 = scmp.ne.s32.totalorder %s73, %s74
      %p83 = scmp.eq.s32.totalorder %s26, 0
      %p84 = por %p82, %p83
      %p85 = scmp.ne.s32.totalorder %s73, %s74
      %p86 = scmp.eq.s32.totalorder %s27, 3
      %p87 = por %p85, %p86
      %p89 = scmp.ne.s32.totalorder %s74, %s88
      %p90 = scmp.eq.s32.totalorder %s27, 0
      %p91 = por %p89, %p90
      %s92 = smul.u32 %s28, 2
      %s93 = sadd.s32 %s92, %s29
      %s94 = smul.u32 %s40, 2
      %s95 = sadd.s32 %s94, %s36
      %s96 = ssub.s32 %s93, %s95
      %p97 = scmp.eq.s32.totalorder %s96, 0
      %s99 = sadd.s32 %s98, 1
      %s100 = scalar_select %p97, %s98, %s99
      %p103 = pneg %p97
      %p104 = scmp.eq.s32.totalorder %s21, 3
      %p105 = por %p103, %p104
      %p106 = scmp.ne.s32.totalorder %s98, %s101
      %p107 = scmp.eq.s32.totalorder %s21, 0
      %p108 = por %p106, %p107
      %p109 = scmp.ne.s32.totalorder %s98, %s101
      %p110 = scmp.eq.s32.totalorder %s26, 3
      %p111 = por %p109, %p110
      %p112 = scmp.ne.s32.totalorder %s101, %s102
      %p113 = scmp.eq.s32.totalorder %s26, 0
      %p114 = por %p112, %p113
      %p115 = scmp.ne.s32.totalorder %s101, %s102
      %p116 = scmp.eq.s32.totalorder %s27, 3
      %p117 = por %p115, %p116
      %p119 = scmp.ne.s32.totalorder %s102, %s118
      %p120 = scmp.eq.s32.totalorder %s27, 0
      %p121 = por %p119, %p120
      %s122 = ssub.s32 %s28, %s40
      %p123 = scmp.eq.s32.totalorder %s122, 0
      %s125 = sadd.s32 %s124, 1
      %s126 = scalar_select %p123, %s124, %s125
      %p129 = pneg %p123
      %p130 = scmp.eq.s32.totalorder %s21, 3
      %p131 = por %p129, %p130
      %p132 = scmp.ne.s32.totalorder %s124, %s127
      %p133 = scmp.eq.s32.totalorder %s21, 0
      %p134 = por %p132, %p133
      %p135 = scmp.ne.s32.totalorder %s124, %s127
      %p136 = scmp.eq.s32.totalorder %s26, 3
      %p137 = por %p135, %p136
      %p138 = scmp.ne.s32.totalorder %s127, %s128
      %p139 = scmp.eq.s32.totalorder %s26, 0
      %p140 = por %p138, %p139
      %p141 = scmp.ne.s32.totalorder %s127, %s128
      %p142 = scmp.eq.s32.totalorder %s27, 3
      %p143 = por %p141, %p142
      %p145 = scmp.ne.s32.totalorder %s128, %s144
      %p146 = scmp.eq.s32.totalorder %s27, 0
      %p147 = por %p145, %p146
      %s148 = ssub.s32 %s28, %s40
      %p149 = scmp.eq.s32.totalorder %s148, 0
      %s151 = sadd.s32 %s150, 1
      %s152 = scalar_select %p149, %s150, %s151
      %p155 = pneg %p149
      %p156 = scmp.eq.s32.totalorder %s21, 3
      %p157 = por %p155, %p156
      %p158 = scmp.ne.s32.totalorder %s150, %s153
      %p159 = scmp.eq.s32.totalorder %s21, 0
      %p160 = por %p158, %p159
      %p161 = scmp.ne.s32.totalorder %s150, %s153
      %p162 = scmp.eq.s32.totalorder %s26, 3
      %p163 = por %p161, %p162
      %p164 = scmp.ne.s32.totalorder %s153, %s154
      %p165 = scmp.eq.s32.totalorder %s26, 0
      %p166 = por %p164, %p165
      %p167 = scmp.ne.s32.totalorder %s153, %s154
      %p168 = scmp.eq.s32.totalorder %s27, 3
      %p169 = por %p167, %p168
      %p171 = scmp.ne.s32.totalorder %s154, %s170
      %p172 = scmp.eq.s32.totalorder %s27, 0
      %p173 = por %p171, %p172
      %p174 = scmp.le.s32.totalorder 1, %s21
      %p175 = scmp.lt.s32.totalorder %s21, 5
      %p176 = pnand %p174, %p175
      %p177 = pneg %p176
      // Predicated region
      $region9: #{tpu_custom_call.1} parent=5 // pred_check
        _
      $region10: #{tpu_custom_call.1} parent=5 // pred_check_branch
        %179 = sbr.rel (%p176) target = $region12
      $region11: #{tpu_custom_call.1} parent=5 // pred_region
        %s180 = ssub.s32 %s21, 1
        // Predicated region
        $region13: #{tpu_custom_call.1} parent=11 // pred_check
          %p181 = pneg %p84
        $region14: #{tpu_custom_call.1} parent=11 // pred_check_branch
          %183 = sbr.rel (%p181) target = $region16
        $region15: #{tpu_custom_call.1} parent=11 // pred_region
          %s185 = ssub.s32 1024, 1024
          %186 = vsyncadd [#allocation6], %s185
          %s187 = sshll.u32 [#allocation5], 4
          %s188 = int_to_ptr.vmem [resolvable:$true] %s187
          %193 = dma.hbm_to_vmem [thread:$0]  %s1, 1024, %s188, [#allocation6], 64, 64, 4
        $region16: #{tpu_custom_call.1} parent=11 // pred_fallthru
          _
      $region12: #{tpu_custom_call.1} parent=5 // pred_fallthru
        _
      %p194 = scmp.lt.s32.totalorder %s21, 4
      // Predicated region
      $region17: #{tpu_custom_call.1} parent=5 // pred_check
        %p195 = pneg %p194
      $region18: #{tpu_custom_call.1} parent=5 // pred_check_branch
        %197 = sbr.rel (%p195) target = $region20
      $region19: #{tpu_custom_call.1} parent=5 // pred_region
        // Predicated region
        $region21: #{tpu_custom_call.1} parent=19 // pred_check
          %p198 = pneg %p57
        $region22: #{tpu_custom_call.1} parent=19 // pred_check_branch
          %200 = sbr.rel (%p198) target = $region24
        $region23: #{tpu_custom_call.1} parent=19 // pred_region
          %s201 = sand.u32 %s47, 1
          %s202 = scalar_lea.sflag [#allocation3], %s201
          %s203 = sand.u32 %s47, 1
          %s204 = smul.addr %s203, 64
          %s205 = scalar_lea.vmem [#allocation2], %s204
          %s206 = smul.u32 %s28, 2
          %s207 = sadd.s32 %s206, %s29
          %s208 = smul.u32 16, %s207
          %s210 = ssub.s32 1024, 1024
          %211 = vsyncadd %s202, %s210
          %s212 = smul.addr %s208, 64
          %s213 = scalar_lea.hbm %s0, %s212
          %s214 = sshll.u32 %s205, 4
          %s215 = int_to_ptr.vmem [resolvable:$true] %s214
          %220 = dma.hbm_to_vmem [thread:$0]  %s213, 1024, %s215, %s202, 64, 64, 4
        $region24: #{tpu_custom_call.1} parent=19 // pred_fallthru
          _
      $region20: #{tpu_custom_call.1} parent=5 // pred_fallthru
        _
      %p221 = scmp.le.s32.totalorder 1, %s21
      %p222 = scmp.lt.s32.totalorder %s21, 5
      %p223 = pnand %p221, %p222
      %p224 = pneg %p223
      // Predicated region
      $region25: #{tpu_custom_call.1} parent=5 // pred_check
        _
      $region26: #{tpu_custom_call.1} parent=5 // pred_check_branch
        %226 = sbr.rel (%p223) target = $region28
      $region27: #{tpu_custom_call.1} parent=5 // pred_region
        %s227 = ssub.s32 %s21, 1
        %s228 = sand.u32 %s50, 1
        %s229 = scalar_lea.sflag [#allocation3], %s228
        %s230 = sand.u32 %s50, 1
        %s231 = smul.addr %s230, 64
        %s232 = scalar_lea.vmem [#allocation2], %s231
        // Predicated region
        $region29: #{tpu_custom_call.1} parent=27 // pred_check
          %p233 = pneg %p63
        $region30: #{tpu_custom_call.1} parent=27 // pred_check_branch
          %235 = sbr.rel (%p233) target = $region32
        $region31: #{tpu_custom_call.1} parent=27 // pred_region
          %236 = dma.done %s229, 1024
        $region32: #{tpu_custom_call.1} parent=27 // pred_fallthru
          _
        // Predicated region
        $region33: #{tpu_custom_call.1} parent=27 // pred_check
          %p237 = pneg %p84
        $region34: #{tpu_custom_call.1} parent=27 // pred_check_branch
          %239 = sbr.rel (%p237) target = $region36
        $region35: #{tpu_custom_call.1} parent=27 // pred_region
          %240 = dma.done [#allocation6], 1024
        $region36: #{tpu_custom_call.1} parent=27 // pred_fallthru
          _
        %s241 = sand.u32 %s50, 1
        %s242 = scalar_lea.sflag [#allocation3], %s241
        %s243 = sand.u32 %s50, 1
        %s244 = smul.addr %s243, 64
        %s245 = scalar_lea.vmem [#allocation2], %s244
        %p246 = pneg %p63
        %p247 = pneg %p60
        %p248 = pneg %p84
        %p249 = pneg %p81
        %p250 = pneg %p114
        %p251 = pneg %p111
        %s252 = sand.u32 %s101, 1
        %s253 = scalar_lea.sflag [#allocation4], %s252
        %s254 = sand.u32 %s101, 1
        %s255 = smul.addr %s254, 64
        %s256 = scalar_lea.vmem [#allocation7], %s255
        %p257 = pneg %p140
        %p258 = pneg %p137
        %s259 = sand.u32 %s26, 1
        %s260 = scalar_lea.sflag [#allocation9], %s259
        %s261 = sand.u32 %s127, 1
        %s262 = scalar_lea.vmem [#allocation8], %s261
        %p263 = pneg %p166
        %p264 = pneg %p163
        %s265 = sand.u32 %s26, 1
        %s266 = scalar_lea.sflag [#allocation9], %s265
        %s267 = sand.u32 %s153, 1
        %s268 = scalar_lea.vmem [#allocation10], %s267
        %s269 = smul.u32 %s30, 2
        %s270 = sadd.s32 %s269, %s31
        %s271 = smul.u32 16, %s270
        %s272 = smul.u32 %s30, 2
        %s273 = sadd.s32 %s272, %s31
        %s274 = smul.u32 16, %s273
        %v276 = vld [vmem:[%s232] sm:$0xf]
        %v277 = vld [vmem:[%s232 + $0x4] sm:$0xf]
        %v278 = vld [vmem:[%s232 + $0x8] sm:$0xf]
        %v279 = vld [vmem:[%s232 + $0xc] sm:$0xf]
        %v280 = vld [vmem:[%s232 + $0x10] sm:$0xf]
        %v281 = vld [vmem:[%s232 + $0x14] sm:$0xf]
        %v282 = vld [vmem:[%s232 + $0x18] sm:$0xf]
        %v283 = vld [vmem:[%s232 + $0x1c] sm:$0xf]
        %v284 = vld [vmem:[%s232 + $0x20] sm:$0xf]
        %v285 = vld [vmem:[%s232 + $0x24] sm:$0xf]
        %v286 = vld [vmem:[%s232 + $0x28] sm:$0xf]
        %v287 = vld [vmem:[%s232 + $0x2c] sm:$0xf]
        %v288 = vld [vmem:[%s232 + $0x30] sm:$0xf]
        %v289 = vld [vmem:[%s232 + $0x34] sm:$0xf]
        %v290 = vld [vmem:[%s232 + $0x38] sm:$0xf]
        %v291 = vld [vmem:[%s232 + $0x3c] sm:$0xf]
        %v292 = vld [vmem:[#allocation5] sm:$0xf]
        %v293 = vld [vmem:[#allocation5 + $0x4] sm:$0xf]
        %v294 = vld [vmem:[#allocation5 + $0x8] sm:$0xf]
        %v295 = vld [vmem:[#allocation5 + $0xc] sm:$0xf]
        %v296 = vld [vmem:[#allocation5 + $0x10] sm:$0xf]
        %v297 = vld [vmem:[#allocation5 + $0x14] sm:$0xf]
        %v298 = vld [vmem:[#allocation5 + $0x18] sm:$0xf]
        %v299 = vld [vmem:[#allocation5 + $0x1c] sm:$0xf]
        %v300 = vld [vmem:[#allocation5 + $0x20] sm:$0xf]
        %v301 = vld [vmem:[#allocation5 + $0x24] sm:$0xf]
        %v302 = vld [vmem:[#allocation5 + $0x28] sm:$0xf]
        %v303 = vld [vmem:[#allocation5 + $0x2c] sm:$0xf]
        %v304 = vld [vmem:[#allocation5 + $0x30] sm:$0xf]
        %v305 = vld [vmem:[#allocation5 + $0x34] sm:$0xf]
        %v306 = vld [vmem:[#allocation5 + $0x38] sm:$0xf]
        %v307 = vld [vmem:[#allocation5 + $0x3c] sm:$0xf]
        %v324 = vunpack.c.l.b16 %v276
        %v325 = vunpack.c.l.b16 %v277
        %v326 = vunpack.c.l.b16 %v278
        %v327 = vunpack.c.l.b16 %v279
        %v328 = vunpack.c.l.b16 %v280
        %v329 = vunpack.c.l.b16 %v281
        %v330 = vunpack.c.l.b16 %v282
        %v331 = vunpack.c.l.b16 %v283
        %v332 = vunpack.c.l.b16 %v284
        %v333 = vunpack.c.l.b16 %v285
        %v334 = vunpack.c.l.b16 %v286
        %v335 = vunpack.c.l.b16 %v287
        %v336 = vunpack.c.l.b16 %v288
        %v337 = vunpack.c.l.b16 %v289
        %v338 = vunpack.c.l.b16 %v290
        %v339 = vunpack.c.l.b16 %v291
        %v340 = vpack.c.b16 %v325, %v324
        %v341 = vpack.c.b16 %v327, %v326
        %v342 = vpack.c.b16 %v329, %v328
        %v343 = vpack.c.b16 %v331, %v330
        %v344 = vpack.c.b16 %v333, %v332
        %v345 = vpack.c.b16 %v335, %v334
        %v346 = vpack.c.b16 %v337, %v336
        %v347 = vpack.c.b16 %v339, %v338
        %v372 = vunpack.c.l.b16 %v292
        %v373 = vunpack.c.l.b16 %v293
        %v374 = vunpack.c.l.b16 %v294
        %v375 = vunpack.c.l.b16 %v295
        %v376 = vunpack.c.l.b16 %v296
        %v377 = vunpack.c.l.b16 %v297
        %v378 = vunpack.c.l.b16 %v298
        %v379 = vunpack.c.l.b16 %v299
        %v380 = vunpack.c.l.b16 %v300
        %v381 = vunpack.c.l.b16 %v301
        %v382 = vunpack.c.l.b16 %v302
        %v383 = vunpack.c.l.b16 %v303
        %v384 = vunpack.c.l.b16 %v304
        %v385 = vunpack.c.l.b16 %v305
        %v386 = vunpack.c.l.b16 %v306
        %v387 = vunpack.c.l.b16 %v307
        %v388 = vpack.c.b16 %v373, %v372
        %v389 = vpack.c.b16 %v375, %v374
        %v390 = vpack.c.b16 %v377, %v376
        %v391 = vpack.c.b16 %v379, %v378
        %v392 = vpack.c.b16 %v381, %v380
        %v393 = vpack.c.b16 %v383, %v382
        %v394 = vpack.c.b16 %v385, %v384
        %v395 = vpack.c.b16 %v387, %v386
        %404 = vmatprep.subr.bf16.mxu0 0
        %405 = vmatpush1.bf16.msra.mxu0 %v388
        %406 = vmatprep.subr.bf16.mxu0 0
        %407 = vmatpush1.bf16.msra.mxu0 %v389
        %408 = vmatprep.subr.bf16.mxu0 0
        %409 = vmatpush1.bf16.msra.mxu0 %v390
        %410 = vmatprep.subr.bf16.mxu0 0
        %411 = vmatpush1.bf16.msra.mxu0 %v391
        %412 = vmatprep.subr.bf16.mxu0 0
        %413 = vmatpush1.bf16.msra.mxu0 %v392
        %414 = vmatprep.subr.bf16.mxu0 0
        %415 = vmatpush1.bf16.msra.mxu0 %v393
        %416 = vmatprep.subr.bf16.mxu0 0
        %417 = vmatpush1.bf16.msra.mxu0 %v394
        %418 = vmatprep.subr.bf16.mxu0 0
        %419 = vmatpush1.bf16.msra.mxu0 %v395
        %420 = vmatprep.subr.bf16.mxu0 0
        %421 = vmatpush1.bf16.msra.mxu0 0
        %422 = vmatprep.subr.bf16.mxu0 0
        %423 = vmatpush1.bf16.msra.mxu0 0
        %424 = vmatprep.subr.bf16.mxu0 0
        %425 = vmatpush1.bf16.msra.mxu0 0
        %426 = vmatprep.subr.bf16.mxu0 0
        %427 = vmatpush1.bf16.msra.mxu0 0
        %428 = vmatprep.subr.bf16.mxu0 0
        %429 = vmatpush1.bf16.msra.mxu0 0
        %430 = vmatprep.subr.bf16.mxu0 0
        %431 = vmatpush1.bf16.msra.mxu0 0
        %432 = vmatprep.subr.bf16.mxu0 0
        %433 = vmatpush1.bf16.msra.mxu0 0
        %434 = vmatprep.subr.bf16.mxu0 0
        %435 = vmatpush1.bf16.msra.mxu0 0
        %436 = vmatprep.mubr.bf16.mxu0 0
        %437 = vmatmul.mubr.bf16.gmra.mrb[0].mxu0 %v340
        %v438 = vpop.f32.mrb[0].mxu0
        %v439 = vadd.f32 0.0, %v438
        %v440 = vpop.f32.mrb[0].mxu0
        %v441 = vpop.f32.mrb[0].mxu0
        %v442 = vadd.f32 0.0, %v441
        %v443 = vpop.f32.mrb[0].mxu0
        %444 = vmatprep.mubr.bf16.mxu0 0
        %445 = vmatmul.mubr.bf16.gmra.mrb[0].mxu0 %v341
        %v446 = vpop.f32.mrb[0].mxu0
        %v447 = vadd.f32 0.0, %v446
        %v448 = vpop.f32.mrb[0].mxu0
        %v449 = vpop.f32.mrb[0].mxu0
        %v450 = vadd.f32 0.0, %v449
        %v451 = vpop.f32.mrb[0].mxu0
        %452 = vmatprep.mubr.bf16.mxu0 0
        %453 = vmatmul.mubr.bf16.gmra.mrb[0].mxu0 %v342
        %v454 = vpop.f32.mrb[0].mxu0
        %v455 = vadd.f32 0.0, %v454
        %v456 = vpop.f32.mrb[0].mxu0
        %v457 = vpop.f32.mrb[0].mxu0
        %v458 = vadd.f32 0.0, %v457
        %v459 = vpop.f32.mrb[0].mxu0
        %460 = vmatprep.mubr.bf16.mxu0 0
        %461 = vmatmul.mubr.bf16.gmra.mrb[0].mxu0 %v343
        %v462 = vpop.f32.mrb[0].mxu0
        %v463 = vadd.f32 0.0, %v462
        %v464 = vpop.f32.mrb[0].mxu0
        %v465 = vpop.f32.mrb[0].mxu0
        %v466 = vadd.f32 0.0, %v465
        %v467 = vpop.f32.mrb[0].mxu0
        %468 = vmatprep.mubr.bf16.mxu0 0
        %469 = vmatmul.mubr.bf16.gmra.mrb[0].mxu0 %v344
        %v470 = vpop.f32.mrb[0].mxu0
        %v471 = vadd.f32 0.0, %v470
        %v472 = vpop.f32.mrb[0].mxu0
        %v473 = vpop.f32.mrb[0].mxu0
        %v474 = vadd.f32 0.0, %v473
        %v475 = vpop.f32.mrb[0].mxu0
        %476 = vmatprep.mubr.bf16.mxu0 0
        %477 = vmatmul.mubr.bf16.gmra.mrb[0].mxu0 %v345
        %v478 = vpop.f32.mrb[0].mxu0
        %v479 = vadd.f32 0.0, %v478
        %v480 = vpop.f32.mrb[0].mxu0
        %v481 = vpop.f32.mrb[0].mxu0
        %v482 = vadd.f32 0.0, %v481
        %v483 = vpop.f32.mrb[0].mxu0
        %484 = vmatprep.mubr.bf16.mxu0 0
        %485 = vmatmul.mubr.bf16.gmra.mrb[0].mxu0 %v346
        %v486 = vpop.f32.mrb[0].mxu0
        %v487 = vadd.f32 0.0, %v486
        %v488 = vpop.f32.mrb[0].mxu0
        %v489 = vpop.f32.mrb[0].mxu0
        %v490 = vadd.f32 0.0, %v489
        %v491 = vpop.f32.mrb[0].mxu0
        %492 = vmatprep.mubr.bf16.mxu0 0
        %493 = vmatmul.mubr.bf16.gmra.mrb[0].mxu0 %v347
        %v494 = vpop.f32.mrb[0].mxu0
        %v495 = vadd.f32 0.0, %v494
        %v496 = vpop.f32.mrb[0].mxu0
        %v497 = vpop.f32.mrb[0].mxu0
        %v498 = vadd.f32 0.0, %v497
        %v499 = vpop.f32.mrb[0].mxu0
        %500 = vdwg.mxu0
        %v501 = vpack.c.bf16 %v442, %v439
        %v502 = vpack.c.bf16 %v450, %v447
        %v503 = vpack.c.bf16 %v458, %v455
        %v504 = vpack.c.bf16 %v466, %v463
        %v505 = vpack.c.bf16 %v474, %v471
        %v506 = vpack.c.bf16 %v482, %v479
        %v507 = vpack.c.bf16 %v490, %v487
        %v508 = vpack.c.bf16 %v498, %v495
        %v517 = vunpack.c.l.b16 %v501
        %v518 = vunpack.c.h.b16 %v501
        %v519 = vunpack.c.l.b16 %v502
        %v520 = vunpack.c.h.b16 %v502
        %v521 = vunpack.c.l.b16 %v503
        %v522 = vunpack.c.h.b16 %v503
        %v523 = vunpack.c.l.b16 %v504
        %v524 = vunpack.c.h.b16 %v504
        %v525 = vunpack.c.l.b16 %v505
        %v526 = vunpack.c.h.b16 %v505
        %v527 = vunpack.c.l.b16 %v506
        %v528 = vunpack.c.h.b16 %v506
        %v529 = vunpack.c.l.b16 %v507
        %v530 = vunpack.c.h.b16 %v507
        %v531 = vunpack.c.l.b16 %v508
        %v532 = vunpack.c.h.b16 %v508
        %v533 = vpack.c.b16 %v517, %v517
        %v534 = vpack.c.b16 %v518, %v518
        %v535 = vpack.c.b16 %v519, %v519
        %v536 = vpack.c.b16 %v520, %v520
        %v537 = vpack.c.b16 %v521, %v521
        %v538 = vpack.c.b16 %v522, %v522
        %v539 = vpack.c.b16 %v523, %v523
        %v540 = vpack.c.b16 %v524, %v524
        %v541 = vpack.c.b16 %v525, %v525
        %v542 = vpack.c.b16 %v526, %v526
        %v543 = vpack.c.b16 %v527, %v527
        %v544 = vpack.c.b16 %v528, %v528
        %v545 = vpack.c.b16 %v529, %v529
        %v546 = vpack.c.b16 %v530, %v530
        %v547 = vpack.c.b16 %v531, %v531
        %v548 = vpack.c.b16 %v532, %v532
        %565 = vst [vmem:[%s256] sm:$0xf] %v533
        %566 = vst [vmem:[%s256 + $0x4] sm:$0xf] %v534
        %567 = vst [vmem:[%s256 + $0x8] sm:$0xf] %v535
        %568 = vst [vmem:[%s256 + $0xc] sm:$0xf] %v536
        %569 = vst [vmem:[%s256 + $0x10] sm:$0xf] %v537
        %570 = vst [vmem:[%s256 + $0x14] sm:$0xf] %v538
        %571 = vst [vmem:[%s256 + $0x18] sm:$0xf] %v539
        %572 = vst [vmem:[%s256 + $0x1c] sm:$0xf] %v540
        %573 = vst [vmem:[%s256 + $0x20] sm:$0xf] %v541
        %574 = vst [vmem:[%s256 + $0x24] sm:$0xf] %v542
        %575 = vst [vmem:[%s256 + $0x28] sm:$0xf] %v543
        %576 = vst [vmem:[%s256 + $0x2c] sm:$0xf] %v544
        %577 = vst [vmem:[%s256 + $0x30] sm:$0xf] %v545
        %578 = vst [vmem:[%s256 + $0x34] sm:$0xf] %v546
        %579 = vst [vmem:[%s256 + $0x38] sm:$0xf] %v547
        %580 = vst [vmem:[%s256 + $0x3c] sm:$0xf] %v548
        %p581 = scmp.eq.s32.totalorder %s31, 0
        // Predicated region
        $region37: #{tpu_custom_call.1} parent=27 // pred_check
          %p582 = pneg %p581
        $region38: #{tpu_custom_call.1} parent=27 // pred_check_branch
          %584 = sbr.rel (%p582) target = $region40
        $region39: #{tpu_custom_call.1} parent=27 // pred_region
          %585 = vst [vmem:[%s262] sm:$0x1] 0.0
          %586 = vst [vmem:[%s268] sm:$0x1] 0.0
        $region40: #{tpu_custom_call.1} parent=27 // pred_fallthru
          _
        %v587 = vld [vmem:[%s262] sm:$0x1]
        %v588 = vadd.f32 %v439, %v442
        %v589 = vadd.f32 %v588, %v447
        %v590 = vadd.f32 %v589, %v450
        %v591 = vadd.f32 %v590, %v455
        %v592 = vadd.f32 %v591, %v458
        %v593 = vadd.f32 %v592, %v463
        %v594 = vadd.f32 %v593, %v466
        %v595 = vadd.f32 %v594, %v471
        %v596 = vadd.f32 %v595, %v474
        %v597 = vadd.f32 %v596, %v479
        %v598 = vadd.f32 %v597, %v482
        %v599 = vadd.f32 %v598, %v487
        %v600 = vadd.f32 %v599, %v490
        %v601 = vadd.f32 %v600, %v495
        %v602 = vadd.f32 %v601, %v498
        %v603 = vrot.slane %v602, 4
        %v604 = vadd.f32 %v602, %v603
        %v605 = vrot.slane %v604, 2
        %v606 = vadd.f32 %v604, %v605
        %v607 = vrot.slane %v606, 1
        %v608 = vadd.f32 %v606, %v607
        %v609 = vadd.f32 %v587, %v608
        %610 = vst [vmem:[%s262] sm:$0x1] %v609
        %v611 = vld [vmem:[%s268] sm:$0x1]
        %v612 = vmul.f32 %v439, %v439
        %v613 = vmul.f32 %v442, %v442
        %v614 = vmul.f32 %v447, %v447
        %v615 = vmul.f32 %v450, %v450
        %v616 = vmul.f32 %v455, %v455
        %v617 = vmul.f32 %v458, %v458
        %v618 = vmul.f32 %v463, %v463
        %v619 = vmul.f32 %v466, %v466
        %v620 = vmul.f32 %v471, %v471
        %v621 = vmul.f32 %v474, %v474
        %v622 = vmul.f32 %v479, %v479
        %v623 = vmul.f32 %v482, %v482
        %v624 = vmul.f32 %v487, %v487
        %v625 = vmul.f32 %v490, %v490
        %v626 = vmul.f32 %v495, %v495
        %v627 = vmul.f32 %v498, %v498
        %v628 = vadd.f32 %v612, %v613
        %v629 = vadd.f32 %v628, %v614
        %v630 = vadd.f32 %v629, %v615
        %v631 = vadd.f32 %v630, %v616
        %v632 = vadd.f32 %v631, %v617
        %v633 = vadd.f32 %v632, %v618
        %v634 = vadd.f32 %v633, %v619
        %v635 = vadd.f32 %v634, %v620
        %v636 = vadd.f32 %v635, %v621
        %v637 = vadd.f32 %v636, %v622
        %v638 = vadd.f32 %v637, %v623
        %v639 = vadd.f32 %v638, %v624
        %v640 = vadd.f32 %v639, %v625
        %v641 = vadd.f32 %v640, %v626
        %v642 = vadd.f32 %v641, %v627
        %v643 = vrot.slane %v642, 4
        %v644 = vadd.f32 %v642, %v643
        %v645 = vrot.slane %v644, 2
        %v646 = vadd.f32 %v644, %v645
        %v647 = vrot.slane %v646, 1
        %v648 = vadd.f32 %v646, %v647
        %v649 = vadd.f32 %v611, %v648
        %650 = vst [vmem:[%s268] sm:$0x1] %v649
        %s651 = sand.u32 %s101, 1
        %s652 = scalar_lea.sflag [#allocation4], %s651
        %s653 = sand.u32 %s101, 1
        %s654 = smul.addr %s653, 64
        %s655 = scalar_lea.vmem [#allocation7], %s654
        %s656 = sand.u32 %s26, 1
        %s657 = scalar_lea.sflag [#allocation9], %s656
        %s658 = sand.u32 %s127, 1
        %s659 = scalar_lea.vmem [#allocation8], %s658
        %s660 = sand.u32 %s26, 1
        %s661 = scalar_lea.sflag [#allocation9], %s660
        %s662 = sand.u32 %s153, 1
        %s663 = scalar_lea.vmem [#allocation10], %s662
        // Predicated region
        $region41: #{tpu_custom_call.1} parent=27 // pred_check
          %p664 = pneg %p111
        $region42: #{tpu_custom_call.1} parent=27 // pred_check_branch
          %666 = sbr.rel (%p664) target = $region44
        $region43: #{tpu_custom_call.1} parent=27 // pred_region
          %s667 = smul.u32 %s30, 2
          %s668 = sadd.s32 %s667, %s31
          %s669 = smul.u32 16, %s668
          %s671 = ssub.s32 1024, 1024
          %672 = vsyncadd %s652, %s671
          %s673 = smul.addr %s669, 64
          %s674 = scalar_lea.hbm %s2, %s673
          %s675 = sshll.u32 %s655, 4
          %s676 = int_to_ptr.vmem [resolvable:$true] %s675
          %681 = dma.vmem_to_hbm [thread:$0]  %s676, 1024, %s674, %s652, 64, 64, 4
        $region44: #{tpu_custom_call.1} parent=27 // pred_fallthru
          _
        // Predicated region
        $region45: #{tpu_custom_call.1} parent=27 // pred_check
          %p682 = pneg %p137
        $region46: #{tpu_custom_call.1} parent=27 // pred_check_branch
          %684 = sbr.rel (%p682) target = $region48
        $region47: #{tpu_custom_call.1} parent=27 // pred_region
          %s686 = ssub.s32 16, 16
          %687 = vsyncadd %s657, %s686
          %s688 = smul.addr %s30, 16
          %s689 = scalar_lea.hbm %s3, %s688
          %s691 = sshll.u32 %s659, 4
          %s692 = int_to_ptr.vmem [resolvable:$true] %s691
          %694 = dma.vmem_to_hbm [thread:$0]  %s692, 16, %s689, %s657
        $region48: #{tpu_custom_call.1} parent=27 // pred_fallthru
          _
        // Predicated region
        $region49: #{tpu_custom_call.1} parent=27 // pred_check
          %p695 = pneg %p163
        $region50: #{tpu_custom_call.1} parent=27 // pred_check_branch
          %697 = sbr.rel (%p695) target = $region52
        $region51: #{tpu_custom_call.1} parent=27 // pred_region
          %s699 = ssub.s32 16, 16
          %700 = vsyncadd %s661, %s699
          %s701 = smul.addr %s30, 16
          %s702 = scalar_lea.hbm %s4, %s701
          %s704 = sshll.u32 %s663, 4
          %s705 = int_to_ptr.vmem [resolvable:$true] %s704
          %707 = dma.vmem_to_hbm [thread:$0]  %s705, 16, %s702, %s661
        $region52: #{tpu_custom_call.1} parent=27 // pred_fallthru
          _
      $region28: #{tpu_custom_call.1} parent=5 // pred_fallthru
        _
      %p708 = scmp.le.s32.totalorder 2, %s21
      // Predicated region
      $region53: #{tpu_custom_call.1} parent=5 // pred_check
        %p709 = pneg %p708
      $region54: #{tpu_custom_call.1} parent=5 // pred_check_branch
        %711 = sbr.rel (%p709) target = $region56
      $region55: #{tpu_custom_call.1} parent=5 // pred_region
        %s712 = ssub.s32 %s21, 2
        // Predicated region
        $region57: #{tpu_custom_call.1} parent=55 // pred_check
          %p713 = pneg %p117
        $region58: #{tpu_custom_call.1} parent=55 // pred_check_branch
          %715 = sbr.rel (%p713) target = $region60
        $region59: #{tpu_custom_call.1} parent=55 // pred_region
          %s716 = sand.u32 %s102, 1
          %s717 = scalar_lea.sflag [#allocation4], %s716
          %s718 = sand.u32 %s102, 1
          %s719 = smul.addr %s718, 64
          %s720 = scalar_lea.vmem [#allocation7], %s719
          %721 = dma.done %s717, 1024
        $region60: #{tpu_custom_call.1} parent=55 // pred_fallthru
          _
        // Predicated region
        $region61: #{tpu_custom_call.1} parent=55 // pred_check
          %p722 = pneg %p143
        $region62: #{tpu_custom_call.1} parent=55 // pred_check_branch
          %724 = sbr.rel (%p722) target = $region64
        $region63: #{tpu_custom_call.1} parent=55 // pred_region
          %s725 = sand.u32 %s27, 1
          %s726 = scalar_lea.sflag [#allocation9], %s725
          %s727 = sand.u32 %s128, 1
          %s728 = scalar_lea.vmem [#allocation8], %s727
          %729 = dma.done %s726, 16
        $region64: #{tpu_custom_call.1} parent=55 // pred_fallthru
          _
        // Predicated region
        $region65: #{tpu_custom_call.1} parent=55 // pred_check
          %p730 = pneg %p169
        $region66: #{tpu_custom_call.1} parent=55 // pred_check_branch
          %732 = sbr.rel (%p730) target = $region68
        $region67: #{tpu_custom_call.1} parent=55 // pred_region
          %s733 = sand.u32 %s27, 1
          %s734 = scalar_lea.sflag [#allocation9], %s733
          %s735 = sand.u32 %s154, 1
          %s736 = scalar_lea.vmem [#allocation10], %s735
          %737 = dma.done %s734, 16
        $region68: #{tpu_custom_call.1} parent=55 // pred_fallthru
          _
      $region56: #{tpu_custom_call.1} parent=5 // pred_fallthru
        _
    $region6: #{tpu_custom_call.1} parent=1 // loop_footer
      %s25 = sadd.s32 1, %s21
    $region7: #{tpu_custom_call.1} parent=1 // loop_footer_branch
      %20 = sbr.rel target = $region3
    $region8: #{tpu_custom_call.1} parent=1 // loop_exit
      _
    %738 = vsyncpa [#allocation3], 1
    %s739 = scalar_lea.sflag [#allocation3], 1
    %740 = vsyncpa %s739, 1
    %741 = vsyncpa [#allocation6], 1
    %742 = vsyncpa [#allocation4], 1
    %s743 = scalar_lea.sflag [#allocation4], 1
    %744 = vsyncpa %s743, 1
    %745 = vsyncpa [#allocation9], 1
    %s746 = scalar_lea.sflag [#allocation9], 1
    %747 = vsyncpa %s746, 1

</llo_original>
